<compile_context>
chip_gen: v6e
topology: v6e:2x2x1
jax: 0.10.0
libtpu: 0.0.40
codegen_flags: <defaults>
</compile_context>

<pallas_src>
import functools
import math

import jax
import jax.numpy as jnp
from jax.experimental import pallas as pl
from jax.experimental.pallas import tpu as pltpu

K = 3          # number of mixture components (matches `k = 3` in the reference)
LANES = 128
SUBLANES = 8
MIN_BLOCKS_PER_SPLIT = 8   # keep enough grid steps per split for load balance


def _default_n_splits():
    """2-way parallel split only where a 'parallel' axis maps to 2 TensorCores."""
    try:
        kind = jax.devices()[0].device_kind.lower()
    except Exception:
        return 1
    if ("v7" in kind) or ("v4" in kind) or ("v5p" in kind):
        return 2
    return 1   # v5e / v6e: single TensorCore -> split is just a serial loop


def _gmm_nll_kernel(mus_ref, coef_ref, a_ref, x_ref, out_ref, acc_ref, *, r_tile):
    # mus_ref / coef_ref / a_ref : SMEM (K,) f32   -- precomputed per-component scalars
    # x_ref   : VMEM (r_tile, 128) f32             -- current sample tile
    # out_ref : SMEM (1, 1) f32                    -- partial sum of log(mix) for this split
    # acc_ref : VMEM (8, 128) f32 scratch          -- vreg-shaped running accumulator
    i = pl.program_id(1)   # reduction axis over sample tiles (axis 0 is the parallel split)

    @pl.when(i == 0)
    def _():
        acc_ref[...] = jnp.zeros_like(acc_ref)

    x = x_ref[...]  # (r_tile, 128)

    # Component 0 initializes `mix` directly (no zero-fill + add).
    d = x - mus_ref[0]
    mix = coef_ref[0] * jnp.exp(a_ref[0] * (d * d))
    for c in range(1, K):  # K is tiny & static -> unrolled elementwise VPU/EUP work
        d = x - mus_ref[c]
        mix = mix + coef_ref[c] * jnp.exp(a_ref[c] * (d * d))

    logmix = jnp.log(mix)

    # Fold the tile into a vreg-shaped accumulator: layout-compatible reshape
    # ((r_tile,128) -> (r_tile/8, 8, 128)) + elementwise vreg adds, no XLU.
    acc_ref[...] += logmix.reshape(r_tile // SUBLANES, SUBLANES, LANES).sum(axis=0)

    @pl.when(i == pl.num_programs(1) - 1)
    def _():
        # One cross-lane reduce per split, not per block.
        out_ref[0, 0] = jnp.sum(acc_ref[...])


def gmm_forward(mus, sigma_params, pi_params, X, *, r_tile=8192, n_splits=None):
    """Pallas equivalent of GMM.forward(X) for a 1-D sample array X."""
    # Parameter transforms (get_dists) + scalar hoisting: K=3 scalars -> plain JAX.
    pis = jax.nn.softmax(pi_params.astype(jnp.float32), axis=0)
    sigmas = jnp.exp(sigma_params.astype(jnp.float32))
    mus = mus.astype(jnp.float32)
    inv_sqrt_2pi = 1.0 / math.sqrt(2.0 * math.pi)
    coef = pis * inv_sqrt_2pi / sigmas        # pi_i / (sigma_i * sqrt(2*pi))
    a = -0.5 / (sigmas * sigmas)              # exponent scale

    if n_splits is None:
        n_splits = _default_n_splits()

    n = int(X.shape[0])
    x = X.astype(jnp.float32).reshape(-1)

    # --- choose tiling for the aligned main body ------------------------------
    rows_avail = n // LANES                           # whole 128-lane rows in X
    # Shrink r_tile for small N so each split keeps >= MIN_BLOCKS_PER_SPLIT
    # blocks (avoids idling a core on v7x); cap at r_tile (4 MiB f32 block,
    # 8 MiB double-buffered -> fits v5e's 16 MiB scoped VMEM and v7x's 64 MiB
    # physical VMEM with plenty of headroom).
    r_tile_eff = min(r_tile,
                     max(SUBLANES, rows_avail // (n_splits * MIN_BLOCKS_PER_SPLIT)))
    r_tile_eff = max(SUBLANES, (r_tile_eff // SUBLANES) * SUBLANES)
    blocks_per_split = rows_avail // (n_splits * r_tile_eff)

    n_main = 0
    main_sum = jnp.float32(0.0)
    if blocks_per_split > 0:
        rows_main = n_splits * blocks_per_split * r_tile_eff
        n_main = rows_main * LANES
        x_main = x[:n_main].reshape(rows_main, LANES)   # no pad; whole blocks only

        kernel = functools.partial(_gmm_nll_kernel, r_tile=r_tile_eff)
        partials = pl.pallas_call(
            kernel,
            out_shape=jax.ShapeDtypeStruct((n_splits, 1), jnp.float32),
            grid=(n_splits, blocks_per_split),
            in_specs=[
                pl.BlockSpec(memory_space=pltpu.SMEM),   # mus   (K,)
                pl.BlockSpec(memory_space=pltpu.SMEM),   # coef  (K,)
                pl.BlockSpec(memory_space=pltpu.SMEM),   # a     (K,)
                pl.BlockSpec((r_tile_eff, LANES),
                             lambda p, i: (p * blocks_per_split + i, 0)),  # X tiles
            ],
            out_specs=pl.BlockSpec((1, 1), lambda p, i: (p, 0),
                                   memory_space=pltpu.SMEM),
            scratch_shapes=[pltpu.VMEM((SUBLANES, LANES), jnp.float32)],
            compiler_params=pltpu.CompilerParams(
                dimension_semantics=("parallel", "arbitrary")),
        )(mus, coef, a, x_main)
        main_sum = jnp.sum(partials)

    # --- tail (< one chunk): a few lines of plain JAX, same formula -----------
    if n_main < n:
        x_tail = x[n_main:]                                  # (n - n_main,) small
        d = x_tail[:, None] - mus[None, :]
        tail_mix = jnp.sum(coef[None, :] * jnp.exp(a[None, :] * (d * d)), axis=1)
        tail_sum = jnp.sum(jnp.log(tail_mix))
    else:
        tail_sum = jnp.float32(0.0)

    return -((main_sum + tail_sum) / n)


def gmm_forward_ref(mus, sigma_params, pi_params, X):
    """Pure-JAX reference for correctness check."""
    pis = jax.nn.softmax(pi_params, axis=0)
    sigmas = jnp.exp(sigma_params)
    inv_sqrt_2pi = 1.0 / math.sqrt(2.0 * math.pi)
    probs = (inv_sqrt_2pi / sigmas[None, :]) * jnp.exp(
        -0.5 * ((X[:, None] - mus[None, :]) / sigmas[None, :]) ** 2
    )
    return -jnp.mean(jnp.log(jnp.sum(probs * pis[None, :], axis=1)))


if __name__ == "__main__":
    key = jax.random.PRNGKey(0)
    k_mu, k_x1, k_x2 = jax.random.split(key, 3)

    # Deterministic parameter init matching nn.Module __init__:
    #   mus ~ randn(k), sigma_params = zeros(k), pi_params = ones(k)
    mus = jax.random.normal(k_mu, (K,), dtype=jnp.float32)
    sigma_params = jnp.zeros((K,), dtype=jnp.float32)
    pi_params = jnp.ones((K,), dtype=jnp.float32)

    # Small 1-D dataset (N=256): exercises the pure-JAX sub-chunk path.
    X_small = jax.random.normal(k_x1, (256,), dtype=jnp.float32)
    nll = jax.block_until_ready(gmm_forward(mus, sigma_params, pi_params, X_small))
    nll_ref = jax.block_until_ready(gmm_forward_ref(mus, sigma_params, pi_params, X_small))
    assert jnp.allclose(nll, nll_ref, rtol=1e-5, atol=1e-5), (nll, nll_ref)

    # Non-aligned N: exercises multi-block accumulation in the Pallas kernel,
    # the (optional) parallel split, and the plain-JAX tail combine.
    X_big = 1.5 * jax.random.normal(k_x2, (131172,), dtype=jnp.float32) + 0.25
    nll_b = jax.block_until_ready(gmm_forward(mus, sigma_params, pi_params, X_big))
    nll_b_ref = jax.block_until_ready(
        gmm_forward_ref(mus, sigma_params, pi_params, X_big))
    assert jnp.allclose(nll_b, nll_b_ref, rtol=1e-4, atol=1e-5), (nll_b, nll_b_ref)

    print("KERNEL_OK")
</pallas_src>

<mosaic_0001>
module attributes {stable_mosaic.version = 11 : i64} {
  func.func @_gmm_nll_kernel(%arg0: i32, %arg1: i32, %arg2: memref<3xf32, #tpu.memory_space<smem>>, %arg3: memref<3xf32, #tpu.memory_space<smem>>, %arg4: memref<3xf32, #tpu.memory_space<smem>>, %arg5: memref<128x128xf32, #tpu.memory_space<vmem>>, %arg6: memref<1x1xf32, #tpu.memory_space<smem>>, %arg7: memref<8x128xf32, #tpu.memory_space<vmem>>) attributes {dimension_semantics = [#tpu.dimension_semantics<parallel>, #tpu.dimension_semantics<arbitrary>], iteration_bounds = array<i64: 1, 8>, scalar_prefetch = 0 : i64, scratch_operands = 1 : i64, tpu.core_type = #tpu.core_type<tc>, window_params = [{transform_indices = @transform_0, window_bounds = array<i64: 3>}, {transform_indices = @transform_1, window_bounds = array<i64: 3>}, {transform_indices = @transform_2, window_bounds = array<i64: 3>}, {transform_indices = @transform_3, window_bounds = array<i64: 128, 128>}, {transform_indices = @transform_4, window_bounds = array<i64: 1, 1>}]} {
    %c0_i32 = arith.constant 0 : i32
    %0 = arith.cmpi eq, %arg1, %c0_i32 : i32
    %1 = arith.extui %0 : i1 to i32
    %c0_i32_0 = arith.constant 0 : i32
    %2 = arith.cmpi ne, %1, %c0_i32_0 : i32
    scf.if %2 {
      %cst_14 = arith.constant 0.000000e+00 : f32
      %48 = vector.broadcast %cst_14 : f32 to vector<8x128xf32>
      %c0_15 = arith.constant 0 : index
      %c0_16 = arith.constant 0 : index
      %49 = vector.load %arg7[%c0_15, %c0_16] : memref<8x128xf32, #tpu.memory_space<vmem>>, vector<8x128xf32>
      tpu.vector_store %arg7[%c0_15, %c0_16], %48 {strides = array<i32>} : memref<8x128xf32, #tpu.memory_space<vmem>>, vector<8x128xf32>,
    } else {
    }
    %c0 = arith.constant 0 : index
    %c0_1 = arith.constant 0 : index
    %3 = vector.load %arg5[%c0, %c0_1] : memref<128x128xf32, #tpu.memory_space<vmem>>, vector<128x128xf32>
    %c0_2 = arith.constant 0 : index
    %4 = memref.load %arg2[%c0_2] : memref<3xf32, #tpu.memory_space<smem>>
    %5 = vector.broadcast %4 : f32 to vector<128x128xf32>
    %6 = arith.subf %3, %5 : vector<128x128xf32>
    %c0_3 = arith.constant 0 : index
    %7 = memref.load %arg3[%c0_3] : memref<3xf32, #tpu.memory_space<smem>>
    %c0_4 = arith.constant 0 : index
    %8 = memref.load %arg4[%c0_4] : memref<3xf32, #tpu.memory_space<smem>>
    %9 = arith.mulf %6, %6 : vector<128x128xf32>
    %10 = vector.broadcast %8 : f32 to vector<128x128xf32>
    %11 = arith.mulf %10, %9 : vector<128x128xf32>
    %12 = math.exp %11 : vector<128x128xf32>
    %13 = vector.broadcast %7 : f32 to vector<128x128xf32>
    %14 = arith.mulf %13, %12 : vector<128x128xf32>
    %c1 = arith.constant 1 : index
    %15 = memref.load %arg2[%c1] : memref<3xf32, #tpu.memory_space<smem>>
    %16 = vector.broadcast %15 : f32 to vector<128x128xf32>
    %17 = arith.subf %3, %16 : vector<128x128xf32>
    %c1_5 = arith.constant 1 : index
    %18 = memref.load %arg3[%c1_5] : memref<3xf32, #tpu.memory_space<smem>>
    %c1_6 = arith.constant 1 : index
    %19 = memref.load %arg4[%c1_6] : memref<3xf32, #tpu.memory_space<smem>>
    %20 = arith.mulf %17, %17 : vector<128x128xf32>
    %21 = vector.broadcast %19 : f32 to vector<128x128xf32>
    %22 = arith.mulf %21, %20 : vector<128x128xf32>
    %23 = math.exp %22 : vector<128x128xf32>
    %24 = vector.broadcast %18 : f32 to vector<128x128xf32>
    %25 = arith.mulf %24, %23 : vector<128x128xf32>
    %26 = arith.addf %14, %25 : vector<128x128xf32>
    %c2 = arith.constant 2 : index
    %27 = memref.load %arg2[%c2] : memref<3xf32, #tpu.memory_space<smem>>
    %28 = vector.broadcast %27 : f32 to vector<128x128xf32>
    %29 = arith.subf %3, %28 : vector<128x128xf32>
    %c2_7 = arith.constant 2 : index
    %30 = memref.load %arg3[%c2_7] : memref<3xf32, #tpu.memory_space<smem>>
    %c2_8 = arith.constant 2 : index
    %31 = memref.load %arg4[%c2_8] : memref<3xf32, #tpu.memory_space<smem>>
    %32 = arith.mulf %29, %29 : vector<128x128xf32>
    %33 = vector.broadcast %31 : f32 to vector<128x128xf32>
    %34 = arith.mulf %33, %32 : vector<128x128xf32>
    %35 = math.exp %34 : vector<128x128xf32>
    %36 = vector.broadcast %30 : f32 to vector<128x128xf32>
    %37 = arith.mulf %36, %35 : vector<128x128xf32>
    %38 = arith.addf %26, %37 : vector<128x128xf32>
    %39 = math.log %38 : vector<128x128xf32>
    %c0_9 = arith.constant 0 : index
    %c0_10 = arith.constant 0 : index
    %40 = vector.load %arg7[%c0_9, %c0_10] : memref<8x128xf32, #tpu.memory_space<vmem>>, vector<8x128xf32>
    %41 = vector.shape_cast %39 : vector<128x128xf32> to vector<16x8x128xf32>
    %cst = arith.constant dense<0.000000e+00> : vector<8x128xf32>
    %42 = vector.multi_reduction <add>, %41, %cst [0] : vector<16x8x128xf32> to vector<8x128xf32>
    %43 = arith.addf %40, %42 : vector<8x128xf32>
    %c0_11 = arith.constant 0 : index
    %c0_12 = arith.constant 0 : index
    %44 = vector.load %arg7[%c0_11, %c0_12] : memref<8x128xf32, #tpu.memory_space<vmem>>, vector<8x128xf32>
    tpu.vector_store %arg7[%c0_11, %c0_12], %43 {strides = array<i32>} : memref<8x128xf32, #tpu.memory_space<vmem>>, vector<8x128xf32>,
    %c7_i32 = arith.constant 7 : i32
    %45 = arith.cmpi eq, %arg1, %c7_i32 : i32
    %46 = arith.extui %45 : i1 to i32
    %c0_i32_13 = arith.constant 0 : i32
    %47 = arith.cmpi ne, %46, %c0_i32_13 : i32
    scf.if %47 {
      %c0_14 = arith.constant 0 : index
      %c0_15 = arith.constant 0 : index
      %48 = vector.load %arg7[%c0_14, %c0_15] : memref<8x128xf32, #tpu.memory_space<vmem>>, vector<8x128xf32>
      %49 = vector.shape_cast %48 : vector<8x128xf32> to vector<1x8x128xf32>
      %cst_16 = arith.constant dense<0.000000e+00> : vector<1xf32>
      %50 = vector.multi_reduction <add>, %49, %cst_16 [1, 2] : vector<1x8x128xf32> to vector<1xf32>
      %51 = vector.shape_cast %50 : vector<1xf32> to vector<1x1x1xf32>
      %52 = vector.extract %51[0, 0, 0] : f32 from vector<1x1x1xf32>
      %c0_17 = arith.constant 0 : index
      %c0_18 = arith.constant 0 : index
      %53 = memref.load %arg6[%c0_17, %c0_18] : memref<1x1xf32, #tpu.memory_space<smem>>
      memref.store %52, %arg6[%c0_17, %c0_18] : memref<1x1xf32, #tpu.memory_space<smem>>
    } else {
    }
    return
  }
  func.func @transform_0(%arg0: i32, %arg1: i32) -> i32 {
    %c0_i32 = arith.constant 0 : i32
    %c0_i32_0 = arith.constant 0 : i32
    return %c0_i32 : i32
  }
  func.func @transform_1(%arg0: i32, %arg1: i32) -> i32 {
    %c0_i32 = arith.constant 0 : i32
    %c0_i32_0 = arith.constant 0 : i32
    return %c0_i32 : i32
  }
  func.func @transform_2(%arg0: i32, %arg1: i32) -> i32 {
    %c0_i32 = arith.constant 0 : i32
    %c0_i32_0 = arith.constant 0 : i32
    return %c0_i32 : i32
  }
  func.func @transform_3(%arg0: i32, %arg1: i32) -> (i32, i32) {
    %c8_i32 = arith.constant 8 : i32
    %0 = arith.muli %arg0, %c8_i32 : i32
    %1 = arith.addi %0, %arg1 : i32
    %c0_i32 = arith.constant 0 : i32
    %c0_i32_0 = arith.constant 0 : i32
    return %1, %c0_i32 : i32, i32
  }
  func.func @transform_4(%arg0: i32, %arg1: i32) -> (i32, i32) {
    %c0_i32 = arith.constant 0 : i32
    %c0_i32_0 = arith.constant 0 : i32
    return %arg0, %c0_i32 : i32, i32
  }
}

</mosaic_0001>

<llo_original>
// kernel: tpu_custom_call.1
$region0: #{tpu_custom_call.1}
  #allocation0 [shape = 'u32[]', space=smem, size = 0x4, offset = 0x4, fixed_abs, tag = 'smem constant byte address 0x4 - core index']
  #allocation1 [shape = 'u32[144,128]{1,0:T(1,128)}', space=vmem, size = 0x12000, scoped, tag = 'internal scratch']
  #allocation2 [shape = 'f32[8,128]{1,0:T(8,128)}', space=vmem, size = 0x1000, scoped, tag = 'scratch operand']
  %s0 = inlined_call_operand.hbm [shape: f32[3], index: 0, kind: input, shape index: {}]
  %s1 = inlined_call_operand.vmem [shape: f32[3], index: 1, kind: input, shape index: {}]
  %s2 = inlined_call_operand.vmem [shape: f32[3], index: 2, kind: input, shape index: {}]
  %s3 = inlined_call_operand.hbm [shape: f32[1024,128], index: 3, kind: input, shape index: {}]
  %s4 = inlined_call_operand.hbm [shape: f32[1,1], index: 4, kind: output, shape index: {}]
  %s5 = sld [smem:[#allocation0]]
  $region73: #{tpu_custom_call.1} parent=0
    _
  %s7 = ssub.s32 1, %s5
  %s8 = scalar_select 0, %s7, %s5
  $region1: #{tpu_custom_call.1} parent=0
    #allocation3 [shape = 'u8[512]{0}', space=smem, size = 0x200, scoped, tag = 'input window, operand 0, single buffered']
    #allocation4 [shape = 's32[2]{0}', space=sflag, size = 0x8, scoped, tag = 'scoped memory for tpu_custom_call.1']
    #allocation5 [shape = 's32[2]{0}', space=sflag, size = 0x8, scoped, tag = 'scoped memory for tpu_custom_call.1']
    #allocation6 [shape = 's32[2]{0}', space=sflag, size = 0x8, scoped, tag = 'scoped memory for tpu_custom_call.1']
    #allocation7 [shape = 's32[2]{0}', space=sflag, size = 0x8, scoped, tag = 'scoped memory for tpu_custom_call.1']
    #allocation8 [shape = 'u8[512]{0}', space=smem, size = 0x200, scoped, tag = 'input window, operand 1, single buffered']
    #allocation9 [shape = 'u8[512]{0}', space=smem, size = 0x200, scoped, tag = 'input window, operand 2, single buffered']
    #allocation10 [shape = 's32[1]{0}', space=sflag, size = 0x4, scoped, tag = 'scoped memory for tpu_custom_call.1']
    #allocation11 [shape = 'u8[131072]{0}', space=vmem, size = 0x20000, scoped, tag = 'input window, operand 3']
    #allocation12 [shape = 'u8[512]{0}', space=smem, size = 0x200, scoped, tag = 'output window, operand 0, single buffered']
    %9 = vsyncpa [#allocation5], 0
    %10 = vsyncpa [#allocation7], 0
    %11 = vsyncpa [#allocation10], 0
    %12 = vsyncpa [#allocation4], 0
    %s13 = scalar_lea.sflag [#allocation4], 1
    %14 = vsyncpa %s13, 0
    %15 = vsyncpa [#allocation6], 0
    loop: start=0, step=1, limit=10
    $region2: #{tpu_custom_call.1} parent=1 // loop_pre_header
      _
    $region3: #{tpu_custom_call.1} parent=1 // loop_header
      %s17 = sphi 0, %s21
      %p18 = scmp.ge.s32.totalorder %s17, 10
      %s24 = sphi 0, %s36
      %s25 = sphi 0, %s32
      %s26 = sphi 0, %s24
      %s27 = sphi 0, %s25
      %s28 = sphi 0, %s26
      %s29 = sphi 0, %s27
      %s37 = sphi 0, %s37
      %s39 = sphi 0, %s37
      %s40 = sphi 0, %s39
      %s54 = sphi 0, %s40
      %s58 = sphi 0, %s58
      %s60 = sphi 0, %s58
      %s61 = sphi 0, %s60
      %s75 = sphi 0, %s61
      %s79 = sphi 0, %s79
      %s81 = sphi 0, %s79
      %s82 = sphi 0, %s81
      %s96 = sphi 0, %s82
      %s106 = sphi 0, %s108
      %s109 = sphi 0, %s106
      %s110 = sphi 0, %s109
      %s126 = sphi 0, %s110
      %s132 = sphi 0, %s134
      %s135 = sphi 0, %s132
      %s136 = sphi 0, %s135
      %s152 = sphi 0, %s136
    $region4: #{tpu_custom_call.1} parent=1 // loop_header_branch
      %20 = sbr.rel (%p18) target = $region8
    $region5: #{tpu_custom_call.1} parent=1 // loop_body
      %s22 = ssub.s32 %s17, 1
      %s23 = ssub.s32 %s17, 2
      %s30 = sadd.s32 1, %s25
      %p31 = scmp.ge.s32.totalorder %s30, 8
      %s32 = scalar_select %p31, 0, %s30
      %s33 = sadd.s32 1, %s24
      %s34 = scalar_select %p31, %s33, %s24
      %p35 = scmp.ge.s32.totalorder %s34, 1
      %s36 = scalar_select %p35, 0, %s34
      %s38 = sadd.s32 %s37, 1
      %p41 = scmp.eq.s32.totalorder %s17, 7
      %p42 = scmp.ne.s32.totalorder %s37, %s39
      %p43 = scmp.eq.s32.totalorder %s17, 0
      %p44 = por %p42, %p43
      %p45 = scmp.ne.s32.totalorder %s37, %s39
      %p46 = scmp.eq.s32.totalorder %s22, 7
      %p47 = por %p45, %p46
      %p48 = scmp.ne.s32.totalorder %s39, %s40
      %p49 = scmp.eq.s32.totalorder %s22, 0
      %p50 = por %p48, %p49
      %p51 = scmp.ne.s32.totalorder %s39, %s40
      %p52 = scmp.eq.s32.totalorder %s23, 7
      %p53 = por %p51, %p52
      %p55 = scmp.ne.s32.totalorder %s40, %s54
      %p56 = scmp.eq.s32.totalorder %s23, 0
      %p57 = por %p55, %p56
      %s59 = sadd.s32 %s58, 1
      %p62 = scmp.eq.s32.totalorder %s17, 7
      %p63 = scmp.ne.s32.totalorder %s58, %s60
      %p64 = scmp.eq.s32.totalorder %s17, 0
      %p65 = por %p63, %p64
      %p66 = scmp.ne.s32.totalorder %s58, %s60
      %p67 = scmp.eq.s32.totalorder %s22, 7
      %p68 = por %p66, %p67
      %p69 = scmp.ne.s32.totalorder %s60, %s61
      %p70 = scmp.eq.s32.totalorder %s22, 0
      %p71 = por %p69, %p70
      %p72 = scmp.ne.s32.totalorder %s60, %s61
      %p73 = scmp.eq.s32.totalorder %s23, 7
      %p74 = por %p72, %p73
      %p76 = scmp.ne.s32.totalorder %s61, %s75
      %p77 = scmp.eq.s32.totalorder %s23, 0
      %p78 = por %p76, %p77
      %s80 = sadd.s32 %s79, 1
      %p83 = scmp.eq.s32.totalorder %s17, 7
      %p84 = scmp.ne.s32.totalorder %s79, %s81
      %p85 = scmp.eq.s32.totalorder %s17, 0
      %p86 = por %p84, %p85
      %p87 = scmp.ne.s32.totalorder %s79, %s81
      %p88 = scmp.eq.s32.totalorder %s22, 7
      %p89 = por %p87, %p88
      %p90 = scmp.ne.s32.totalorder %s81, %s82
      %p91 = scmp.eq.s32.totalorder %s22, 0
      %p92 = por %p90, %p91
      %p93 = scmp.ne.s32.totalorder %s81, %s82
      %p94 = scmp.eq.s32.totalorder %s23, 7
      %p95 = por %p93, %p94
      %p97 = scmp.ne.s32.totalorder %s82, %s96
      %p98 = scmp.eq.s32.totalorder %s23, 0
      %p99 = por %p97, %p98
      %s100 = smul.u32 %s24, 8
      %s101 = sadd.s32 %s100, %s25
      %s102 = smul.u32 %s36, 8
      %s103 = sadd.s32 %s102, %s32
      %s104 = ssub.s32 %s101, %s103
      %p105 = scmp.eq.s32.totalorder %s104, 0
      %s107 = sadd.s32 %s106, 1
      %s108 = scalar_select %p105, %s106, %s107
      %p111 = pneg %p105
      %p112 = scmp.eq.s32.totalorder %s17, 7
      %p113 = por %p111, %p112
      %p114 = scmp.ne.s32.totalorder %s106, %s109
      %p115 = scmp.eq.s32.totalorder %s17, 0
      %p116 = por %p114, %p115
      %p117 = scmp.ne.s32.totalorder %s106, %s109
      %p118 = scmp.eq.s32.totalorder %s22, 7
      %p119 = por %p117, %p118
      %p120 = scmp.ne.s32.totalorder %s109, %s110
      %p121 = scmp.eq.s32.totalorder %s22, 0
      %p122 = por %p120, %p121
      %p123 = scmp.ne.s32.totalorder %s109, %s110
      %p124 = scmp.eq.s32.totalorder %s23, 7
      %p125 = por %p123, %p124
      %p127 = scmp.ne.s32.totalorder %s110, %s126
      %p128 = scmp.eq.s32.totalorder %s23, 0
      %p129 = por %p127, %p128
      %s130 = ssub.s32 %s24, %s36
      %p131 = scmp.eq.s32.totalorder %s130, 0
      %s133 = sadd.s32 %s132, 1
      %s134 = scalar_select %p131, %s132, %s133
      %p137 = pneg %p131
      %p138 = scmp.eq.s32.totalorder %s17, 7
      %p139 = por %p137, %p138
      %p140 = scmp.ne.s32.totalorder %s132, %s135
      %p141 = scmp.eq.s32.totalorder %s17, 0
      %p142 = por %p140, %p141
      %p143 = scmp.ne.s32.totalorder %s132, %s135
      %p144 = scmp.eq.s32.totalorder %s22, 7
      %p145 = por %p143, %p144
      %p146 = scmp.ne.s32.totalorder %s135, %s136
      %p147 = scmp.eq.s32.totalorder %s22, 0
      %p148 = por %p146, %p147
      %p149 = scmp.ne.s32.totalorder %s135, %s136
      %p150 = scmp.eq.s32.totalorder %s23, 7
      %p151 = por %p149, %p150
      %p153 = scmp.ne.s32.totalorder %s136, %s152
      %p154 = scmp.eq.s32.totalorder %s23, 0
      %p155 = por %p153, %p154
      %p156 = scmp.le.s32.totalorder 1, %s17
      %p157 = scmp.lt.s32.totalorder %s17, 9
      %p158 = pnand %p156, %p157
      %p159 = pneg %p158
      // Predicated region
      $region9: #{tpu_custom_call.1} parent=5 // pred_check
        _
      $region10: #{tpu_custom_call.1} parent=5 // pred_check_branch
        %161 = sbr.rel (%p158) target = $region12
      $region11: #{tpu_custom_call.1} parent=5 // pred_region
        %s162 = ssub.s32 %s17, 1
        // Predicated region
        $region13: #{tpu_custom_call.1} parent=11 // pred_check
          %p163 = pneg %p50
        $region14: #{tpu_custom_call.1} parent=11 // pred_check_branch
          %165 = sbr.rel (%p163) target = $region16
        $region15: #{tpu_custom_call.1} parent=11 // pred_region
          %s167 = ssub.s32 16, 16
          %168 = vsyncadd [#allocation5], %s167
          %171 = dma.hbm_to_smem %s0, 16, [#allocation3], [#allocation5]
        $region16: #{tpu_custom_call.1} parent=11 // pred_fallthru
          _
        // Predicated region
        $region17: #{tpu_custom_call.1} parent=11 // pred_check
          %p172 = pneg %p71
        $region18: #{tpu_custom_call.1} parent=11 // pred_check_branch
          %174 = sbr.rel (%p172) target = $region20
        $region19: #{tpu_custom_call.1} parent=11 // pred_region
          %s176 = ssub.s32 16, 16
          %177 = vsyncadd [#allocation7], %s176
          %s179 = sshll.u32 %s1, 4
          %s180 = int_to_ptr.vmem [resolvable:$true] %s179
          %182 = dma.vmem_to_smem %s180, 16, [#allocation8], [#allocation7]
        $region20: #{tpu_custom_call.1} parent=11 // pred_fallthru
          _
        // Predicated region
        $region21: #{tpu_custom_call.1} parent=11 // pred_check
          %p183 = pneg %p92
        $region22: #{tpu_custom_call.1} parent=11 // pred_check_branch
          %185 = sbr.rel (%p183) target = $region24
        $region23: #{tpu_custom_call.1} parent=11 // pred_region
          %s187 = ssub.s32 16, 16
          %188 = vsyncadd [#allocation10], %s187
          %s190 = sshll.u32 %s2, 4
          %s191 = int_to_ptr.vmem [resolvable:$true] %s190
          %193 = dma.vmem_to_smem %s191, 16, [#allocation9], [#allocation10]
        $region24: #{tpu_custom_call.1} parent=11 // pred_fallthru
          _
      $region12: #{tpu_custom_call.1} parent=5 // pred_fallthru
        _
      %p194 = scmp.lt.s32.totalorder %s17, 8
      // Predicated region
      $region25: #{tpu_custom_call.1} parent=5 // pred_check
        %p195 = pneg %p194
      $region26: #{tpu_custom_call.1} parent=5 // pred_check_branch
        %197 = sbr.rel (%p195) target = $region28
      $region27: #{tpu_custom_call.1} parent=5 // pred_region
        // Predicated region
        $region29: #{tpu_custom_call.1} parent=27 // pred_check
          %p198 = pneg %p116
        $region30: #{tpu_custom_call.1} parent=27 // pred_check_branch
          %200 = sbr.rel (%p198) target = $region32
        $region31: #{tpu_custom_call.1} parent=27 // pred_region
          %s201 = sand.u32 %s106, 1
          %s202 = scalar_lea.sflag [#allocation4], %s201
          %s203 = sand.u32 %s106, 1
          %s204 = smul.addr %s203, 128
          %s205 = scalar_lea.vmem [#allocation11], %s204
          %s206 = smul.u32 %s24, 8
          %s207 = sadd.s32 %s206, %s25
          %s208 = smul.u32 16, %s207
          %s210 = ssub.s32 2048, 2048
          %211 = vsyncadd %s202, %s210
          %s212 = smul.addr %s208, 128
          %s213 = scalar_lea.hbm %s3, %s212
          %s214 = sshll.u32 %s205, 4
          %s215 = int_to_ptr.vmem [resolvable:$true] %s214
          %220 = dma.hbm_to_vmem [thread:$0]  %s213, 2048, %s215, %s202, 128, 128, 8
        $region32: #{tpu_custom_call.1} parent=27 // pred_fallthru
          _
      $region28: #{tpu_custom_call.1} parent=5 // pred_fallthru
        _
      %p221 = scmp.le.s32.totalorder 1, %s17
      %p222 = scmp.lt.s32.totalorder %s17, 9
      %p223 = pnand %p221, %p222
      %p224 = pneg %p223
      // Predicated region
      $region33: #{tpu_custom_call.1} parent=5 // pred_check
        _
      $region34: #{tpu_custom_call.1} parent=5 // pred_check_branch
        %226 = sbr.rel (%p223) target = $region36
      $region35: #{tpu_custom_call.1} parent=5 // pred_region
        %s227 = ssub.s32 %s17, 1
        // Predicated region
        $region37: #{tpu_custom_call.1} parent=35 // pred_check
          %p228 = pneg %p50
        $region38: #{tpu_custom_call.1} parent=35 // pred_check_branch
          %230 = sbr.rel (%p228) target = $region40
        $region39: #{tpu_custom_call.1} parent=35 // pred_region
          %231 = dma.done [#allocation5], 16
        $region40: #{tpu_custom_call.1} parent=35 // pred_fallthru
          _
        // Predicated region
        $region41: #{tpu_custom_call.1} parent=35 // pred_check
          %p232 = pneg %p71
        $region42: #{tpu_custom_call.1} parent=35 // pred_check_branch
          %234 = sbr.rel (%p232) target = $region44
        $region43: #{tpu_custom_call.1} parent=35 // pred_region
          %235 = dma.done [#allocation7], 16
        $region44: #{tpu_custom_call.1} parent=35 // pred_fallthru
          _
        // Predicated region
        $region45: #{tpu_custom_call.1} parent=35 // pred_check
          %p236 = pneg %p92
        $region46: #{tpu_custom_call.1} parent=35 // pred_check_branch
          %238 = sbr.rel (%p236) target = $region48
        $region47: #{tpu_custom_call.1} parent=35 // pred_region
          %239 = dma.done [#allocation10], 16
        $region48: #{tpu_custom_call.1} parent=35 // pred_fallthru
          _
        %s240 = sand.u32 %s109, 1
        %s241 = scalar_lea.sflag [#allocation4], %s240
        %s242 = sand.u32 %s109, 1
        %s243 = smul.addr %s242, 128
        %s244 = scalar_lea.vmem [#allocation11], %s243
        // Predicated region
        $region49: #{tpu_custom_call.1} parent=35 // pred_check
          %p245 = pneg %p122
        $region50: #{tpu_custom_call.1} parent=35 // pred_check_branch
          %247 = sbr.rel (%p245) target = $region52
        $region51: #{tpu_custom_call.1} parent=35 // pred_region
          %248 = dma.done %s241, 2048
        $region52: #{tpu_custom_call.1} parent=35 // pred_fallthru
          _
        %249 = sfence
        %p250 = pneg %p50
        %p251 = pneg %p47
        %p252 = pneg %p71
        %p253 = pneg %p68
        %p254 = pneg %p92
        %p255 = pneg %p89
        %s256 = sand.u32 %s109, 1
        %s257 = scalar_lea.sflag [#allocation4], %s256
        %s258 = sand.u32 %s109, 1
        %s259 = smul.addr %s258, 128
        %s260 = scalar_lea.vmem [#allocation11], %s259
        %p261 = pneg %p122
        %p262 = pneg %p119
        %p263 = pneg %p148
        %p264 = pneg %p145
        %s265 = smul.u32 %s26, 8
        %s266 = sadd.s32 %s265, %s27
        %s267 = smul.u32 16, %s266
        %p268 = scmp.eq.s32.totalorder %s27, 0
        // Predicated region
        $region53: #{tpu_custom_call.1} parent=35 // pred_check
          %p269 = pneg %p268
        $region54: #{tpu_custom_call.1} parent=35 // pred_check_branch
          %271 = sbr.rel (%p269) target = $region56
        $region55: #{tpu_custom_call.1} parent=35 // pred_region
          %272 = vst [vmem:[#allocation2] sm:$0xff] 0.0
        $region56: #{tpu_custom_call.1} parent=35 // pred_fallthru
          _
        %v273 = vld [vmem:[%s244] sm:$0xff]
        %v274 = vld [vmem:[%s244 + $0x8] sm:$0xff]
        %v275 = vld [vmem:[%s244 + $0x10] sm:$0xff]
        %v276 = vld [vmem:[%s244 + $0x18] sm:$0xff]
        %v277 = vld [vmem:[%s244 + $0x20] sm:$0xff]
        %v278 = vld [vmem:[%s244 + $0x28] sm:$0xff]
        %v279 = vld [vmem:[%s244 + $0x30] sm:$0xff]
        %v280 = vld [vmem:[%s244 + $0x38] sm:$0xff]
        %v281 = vld [vmem:[%s244 + $0x40] sm:$0xff]
        %v282 = vld [vmem:[%s244 + $0x48] sm:$0xff]
        %v283 = vld [vmem:[%s244 + $0x50] sm:$0xff]
        %v284 = vld [vmem:[%s244 + $0x58] sm:$0xff]
        %v285 = vld [vmem:[%s244 + $0x60] sm:$0xff]
        %v286 = vld [vmem:[%s244 + $0x68] sm:$0xff]
        %v287 = vld [vmem:[%s244 + $0x70] sm:$0xff]
        %v288 = vld [vmem:[%s244 + $0x78] sm:$0xff]
        %s289 = sld [smem:[#allocation3]]
        %v290 = vstv %s289
        %v291 = vsub.f32 %v273, %v290
        %v292 = vsub.f32 %v274, %v290
        %v293 = vsub.f32 %v275, %v290
        %v294 = vsub.f32 %v276, %v290
        %v295 = vsub.f32 %v277, %v290
        %v296 = vsub.f32 %v278, %v290
        %v297 = vsub.f32 %v279, %v290
        %v298 = vsub.f32 %v280, %v290
        %v299 = vsub.f32 %v281, %v290
        %v300 = vsub.f32 %v282, %v290
        %v301 = vsub.f32 %v283, %v290
        %v302 = vsub.f32 %v284, %v290
        %v303 = vsub.f32 %v285, %v290
        %v304 = vsub.f32 %v286, %v290
        %v305 = vsub.f32 %v287, %v290
        %v306 = vsub.f32 %v288, %v290
        %s307 = sld [smem:[#allocation8]]
        %s308 = sld [smem:[#allocation9]]
        %v309 = vmul.f32 %v291, %v291
        %v310 = vmul.f32 %v292, %v292
        %v311 = vmul.f32 %v293, %v293
        %v312 = vmul.f32 %v294, %v294
        %v313 = vmul.f32 %v295, %v295
        %v314 = vmul.f32 %v296, %v296
        %v315 = vmul.f32 %v297, %v297
        %v316 = vmul.f32 %v298, %v298
        %v317 = vmul.f32 %v299, %v299
        %v318 = vmul.f32 %v300, %v300
        %v319 = vmul.f32 %v301, %v301
        %v320 = vmul.f32 %v302, %v302
        %v321 = vmul.f32 %v303, %v303
        %v322 = vmul.f32 %v304, %v304
        %v323 = vmul.f32 %v305, %v305
        %v324 = vmul.f32 %v306, %v306
        %v325 = vstv %s308
        %v326 = vmul.f32 %v325, %v309
        %v327 = vmul.f32 %v325, %v310
        %v328 = vmul.f32 %v325, %v311
        %v329 = vmul.f32 %v325, %v312
        %v330 = vmul.f32 %v325, %v313
        %v331 = vmul.f32 %v325, %v314
        %v332 = vmul.f32 %v325, %v315
        %v333 = vmul.f32 %v325, %v316
        %v334 = vmul.f32 %v325, %v317
        %v335 = vmul.f32 %v325, %v318
        %v336 = vmul.f32 %v325, %v319
        %v337 = vmul.f32 %v325, %v320
        %v338 = vmul.f32 %v325, %v321
        %v339 = vmul.f32 %v325, %v322
        %v340 = vmul.f32 %v325, %v323
        %v341 = vmul.f32 %v325, %v324
        %v342 = vmul.f32 %v326, 1.442695
        %v343 = vpow.pop %v342
        %v344 = vmul.f32 %v327, 1.442695
        %v345 = vpow.pop %v344
        %v346 = vmul.f32 %v328, 1.442695
        %v347 = vpow.pop %v346
        %v348 = vmul.f32 %v329, 1.442695
        %v349 = vpow.pop %v348
        %v350 = vmul.f32 %v330, 1.442695
        %v351 = vpow.pop %v350
        %v352 = vmul.f32 %v331, 1.442695
        %v353 = vpow.pop %v352
        %v354 = vmul.f32 %v332, 1.442695
        %v355 = vpow.pop %v354
        %v356 = vmul.f32 %v333, 1.442695
        %v357 = vpow.pop %v356
        %v358 = vmul.f32 %v334, 1.442695
        %v359 = vpow.pop %v358
        %v360 = vmul.f32 %v335, 1.442695
        %v361 = vpow.pop %v360
        %v362 = vmul.f32 %v336, 1.442695
        %v363 = vpow.pop %v362
        %v364 = vmul.f32 %v337, 1.442695
        %v365 = vpow.pop %v364
        %v366 = vmul.f32 %v338, 1.442695
        %v367 = vpow.pop %v366
        %v368 = vmul.f32 %v339, 1.442695
        %v369 = vpow.pop %v368
        %v370 = vmul.f32 %v340, 1.442695
        %v371 = vpow.pop %v370
        %v372 = vmul.f32 %v341, 1.442695
        %v373 = vpow.pop %v372
        %v374 = vstv %s307
        %v375 = vmul.f32 %v374, %v343
        %v376 = vmul.f32 %v374, %v345
        %v377 = vmul.f32 %v374, %v347
        %v378 = vmul.f32 %v374, %v349
        %v379 = vmul.f32 %v374, %v351
        %v380 = vmul.f32 %v374, %v353
        %v381 = vmul.f32 %v374, %v355
        %v382 = vmul.f32 %v374, %v357
        %v383 = vmul.f32 %v374, %v359
        %v384 = vmul.f32 %v374, %v361
        %v385 = vmul.f32 %v374, %v363
        %v386 = vmul.f32 %v374, %v365
        %v387 = vmul.f32 %v374, %v367
        %v388 = vmul.f32 %v374, %v369
        %v389 = vmul.f32 %v374, %v371
        %v390 = vmul.f32 %v374, %v373
        %s391 = sld [smem:[#allocation3 + $0x1]]
        %v392 = vstv %s391
        %v393 = vsub.f32 %v273, %v392
        %v394 = vsub.f32 %v274, %v392
        %v395 = vsub.f32 %v275, %v392
        %v396 = vsub.f32 %v276, %v392
        %v397 = vsub.f32 %v277, %v392
        %v398 = vsub.f32 %v278, %v392
        %v399 = vsub.f32 %v279, %v392
        %v400 = vsub.f32 %v280, %v392
        %v401 = vsub.f32 %v281, %v392
        %v402 = vsub.f32 %v282, %v392
        %v403 = vsub.f32 %v283, %v392
        %v404 = vsub.f32 %v284, %v392
        %v405 = vsub.f32 %v285, %v392
        %v406 = vsub.f32 %v286, %v392
        %v407 = vsub.f32 %v287, %v392
        %v408 = vsub.f32 %v288, %v392
        %s409 = sld [smem:[#allocation8 + $0x1]]
        %s410 = sld [smem:[#allocation9 + $0x1]]
        %v411 = vmul.f32 %v393, %v393
        %v412 = vmul.f32 %v394, %v394
        %v413 = vmul.f32 %v395, %v395
        %v414 = vmul.f32 %v396, %v396
        %v415 = vmul.f32 %v397, %v397
        %v416 = vmul.f32 %v398, %v398
        %v417 = vmul.f32 %v399, %v399
        %v418 = vmul.f32 %v400, %v400
        %v419 = vmul.f32 %v401, %v401
        %v420 = vmul.f32 %v402, %v402
        %v421 = vmul.f32 %v403, %v403
        %v422 = vmul.f32 %v404, %v404
        %v423 = vmul.f32 %v405, %v405
        %v424 = vmul.f32 %v406, %v406
        %v425 = vmul.f32 %v407, %v407
        %v426 = vmul.f32 %v408, %v408
        %v427 = vstv %s410
        %v428 = vmul.f32 %v427, %v411
        %v429 = vmul.f32 %v427, %v412
        %v430 = vmul.f32 %v427, %v413
        %v431 = vmul.f32 %v427, %v414
        %v432 = vmul.f32 %v427, %v415
        %v433 = vmul.f32 %v427, %v416
        %v434 = vmul.f32 %v427, %v417
        %v435 = vmul.f32 %v427, %v418
        %v436 = vmul.f32 %v427, %v419
        %v437 = vmul.f32 %v427, %v420
        %v438 = vmul.f32 %v427, %v421
        %v439 = vmul.f32 %v427, %v422
        %v440 = vmul.f32 %v427, %v423
        %v441 = vmul.f32 %v427, %v424
        %v442 = vmul.f32 %v427, %v425
        %v443 = vmul.f32 %v427, %v426
        %v444 = vmul.f32 %v428, 1.442695
        %v445 = vpow.pop %v444
        %v446 = vmul.f32 %v429, 1.442695
        %v447 = vpow.pop %v446
        %v448 = vmul.f32 %v430, 1.442695
        %v449 = vpow.pop %v448
        %v450 = vmul.f32 %v431, 1.442695
        %v451 = vpow.pop %v450
        %v452 = vmul.f32 %v432, 1.442695
        %v453 = vpow.pop %v452
        %v454 = vmul.f32 %v433, 1.442695
        %v455 = vpow.pop %v454
        %v456 = vmul.f32 %v434, 1.442695
        %v457 = vpow.pop %v456
        %v458 = vmul.f32 %v435, 1.442695
        %v459 = vpow.pop %v458
        %v460 = vmul.f32 %v436, 1.442695
        %v461 = vpow.pop %v460
        %v462 = vmul.f32 %v437, 1.442695
        %v463 = vpow.pop %v462
        %v464 = vmul.f32 %v438, 1.442695
        %v465 = vpow.pop %v464
        %v466 = vmul.f32 %v439, 1.442695
        %v467 = vpow.pop %v466
        %v468 = vmul.f32 %v440, 1.442695
        %v469 = vpow.pop %v468
        %v470 = vmul.f32 %v441, 1.442695
        %v471 = vpow.pop %v470
        %v472 = vmul.f32 %v442, 1.442695
        %v473 = vpow.pop %v472
        %v474 = vmul.f32 %v443, 1.442695
        %v475 = vpow.pop %v474
        %v476 = vstv %s409
        %v477 = vmul.f32 %v476, %v445
        %v478 = vmul.f32 %v476, %v447
        %v479 = vmul.f32 %v476, %v449
        %v480 = vmul.f32 %v476, %v451
        %v481 = vmul.f32 %v476, %v453
        %v482 = vmul.f32 %v476, %v455
        %v483 = vmul.f32 %v476, %v457
        %v484 = vmul.f32 %v476, %v459
        %v485 = vmul.f32 %v476, %v461
        %v486 = vmul.f32 %v476, %v463
        %v487 = vmul.f32 %v476, %v465
        %v488 = vmul.f32 %v476, %v467
        %v489 = vmul.f32 %v476, %v469
        %v490 = vmul.f32 %v476, %v471
        %v491 = vmul.f32 %v476, %v473
        %v492 = vmul.f32 %v476, %v475
        %v493 = vadd.f32 %v375, %v477
        %v494 = vadd.f32 %v376, %v478
        %v495 = vadd.f32 %v377, %v479
        %v496 = vadd.f32 %v378, %v480
        %v497 = vadd.f32 %v379, %v481
        %v498 = vadd.f32 %v380, %v482
        %v499 = vadd.f32 %v381, %v483
        %v500 = vadd.f32 %v382, %v484
        %v501 = vadd.f32 %v383, %v485
        %v502 = vadd.f32 %v384, %v486
        %v503 = vadd.f32 %v385, %v487
        %v504 = vadd.f32 %v386, %v488
        %v505 = vadd.f32 %v387, %v489
        %v506 = vadd.f32 %v388, %v490
        %v507 = vadd.f32 %v389, %v491
        %v508 = vadd.f32 %v390, %v492
        %s509 = sld [smem:[#allocation3 + $0x2]]
        %v510 = vstv %s509
        %v511 = vsub.f32 %v273, %v510
        %v512 = vsub.f32 %v274, %v510
        %v513 = vsub.f32 %v275, %v510
        %v514 = vsub.f32 %v276, %v510
        %v515 = vsub.f32 %v277, %v510
        %v516 = vsub.f32 %v278, %v510
        %v517 = vsub.f32 %v279, %v510
        %v518 = vsub.f32 %v280, %v510
        %v519 = vsub.f32 %v281, %v510
        %v520 = vsub.f32 %v282, %v510
        %v521 = vsub.f32 %v283, %v510
        %v522 = vsub.f32 %v284, %v510
        %v523 = vsub.f32 %v285, %v510
        %v524 = vsub.f32 %v286, %v510
        %v525 = vsub.f32 %v287, %v510
        %v526 = vsub.f32 %v288, %v510
        %s527 = sld [smem:[#allocation8 + $0x2]]
        %s528 = sld [smem:[#allocation9 + $0x2]]
        %v529 = vmul.f32 %v511, %v511
        %v530 = vmul.f32 %v512, %v512
        %v531 = vmul.f32 %v513, %v513
        %v532 = vmul.f32 %v514, %v514
        %v533 = vmul.f32 %v515, %v515
        %v534 = vmul.f32 %v516, %v516
        %v535 = vmul.f32 %v517, %v517
        %v536 = vmul.f32 %v518, %v518
        %v537 = vmul.f32 %v519, %v519
        %v538 = vmul.f32 %v520, %v520
        %v539 = vmul.f32 %v521, %v521
        %v540 = vmul.f32 %v522, %v522
        %v541 = vmul.f32 %v523, %v523
        %v542 = vmul.f32 %v524, %v524
        %v543 = vmul.f32 %v525, %v525
        %v544 = vmul.f32 %v526, %v526
        %v545 = vstv %s528
        %v546 = vmul.f32 %v545, %v529
        %v547 = vmul.f32 %v545, %v530
        %v548 = vmul.f32 %v545, %v531
        %v549 = vmul.f32 %v545, %v532
        %v550 = vmul.f32 %v545, %v533
        %v551 = vmul.f32 %v545, %v534
        %v552 = vmul.f32 %v545, %v535
        %v553 = vmul.f32 %v545, %v536
        %v554 = vmul.f32 %v545, %v537
        %v555 = vmul.f32 %v545, %v538
        %v556 = vmul.f32 %v545, %v539
        %v557 = vmul.f32 %v545, %v540
        %v558 = vmul.f32 %v545, %v541
        %v559 = vmul.f32 %v545, %v542
        %v560 = vmul.f32 %v545, %v543
        %v561 = vmul.f32 %v545, %v544
        %v562 = vmul.f32 %v546, 1.442695
        %v563 = vpow.pop %v562
        %v564 = vmul.f32 %v547, 1.442695
        %v565 = vpow.pop %v564
        %v566 = vmul.f32 %v548, 1.442695
        %v567 = vpow.pop %v566
        %v568 = vmul.f32 %v549, 1.442695
        %v569 = vpow.pop %v568
        %v570 = vmul.f32 %v550, 1.442695
        %v571 = vpow.pop %v570
        %v572 = vmul.f32 %v551, 1.442695
        %v573 = vpow.pop %v572
        %v574 = vmul.f32 %v552, 1.442695
        %v575 = vpow.pop %v574
        %v576 = vmul.f32 %v553, 1.442695
        %v577 = vpow.pop %v576
        %v578 = vmul.f32 %v554, 1.442695
        %v579 = vpow.pop %v578
        %v580 = vmul.f32 %v555, 1.442695
        %v581 = vpow.pop %v580
        %v582 = vmul.f32 %v556, 1.442695
        %v583 = vpow.pop %v582
        %v584 = vmul.f32 %v557, 1.442695
        %v585 = vpow.pop %v584
        %v586 = vmul.f32 %v558, 1.442695
        %v587 = vpow.pop %v586
        %v588 = vmul.f32 %v559, 1.442695
        %v589 = vpow.pop %v588
        %v590 = vmul.f32 %v560, 1.442695
        %v591 = vpow.pop %v590
        %v592 = vmul.f32 %v561, 1.442695
        %v593 = vpow.pop %v592
        %v594 = vstv %s527
        %v595 = vmul.f32 %v594, %v563
        %v596 = vmul.f32 %v594, %v565
        %v597 = vmul.f32 %v594, %v567
        %v598 = vmul.f32 %v594, %v569
        %v599 = vmul.f32 %v594, %v571
        %v600 = vmul.f32 %v594, %v573
        %v601 = vmul.f32 %v594, %v575
        %v602 = vmul.f32 %v594, %v577
        %v603 = vmul.f32 %v594, %v579
        %v604 = vmul.f32 %v594, %v581
        %v605 = vmul.f32 %v594, %v583
        %v606 = vmul.f32 %v594, %v585
        %v607 = vmul.f32 %v594, %v587
        %v608 = vmul.f32 %v594, %v589
        %v609 = vmul.f32 %v594, %v591
        %v610 = vmul.f32 %v594, %v593
        %v611 = vadd.f32 %v493, %v595
        %v612 = vadd.f32 %v494, %v596
        %v613 = vadd.f32 %v495, %v597
        %v614 = vadd.f32 %v496, %v598
        %v615 = vadd.f32 %v497, %v599
        %v616 = vadd.f32 %v498, %v600
        %v617 = vadd.f32 %v499, %v601
        %v618 = vadd.f32 %v500, %v602
        %v619 = vadd.f32 %v501, %v603
        %v620 = vadd.f32 %v502, %v604
        %v621 = vadd.f32 %v503, %v605
        %v622 = vadd.f32 %v504, %v606
        %v623 = vadd.f32 %v505, %v607
        %v624 = vadd.f32 %v506, %v608
        %v625 = vadd.f32 %v507, %v609
        %v626 = vadd.f32 %v508, %v610
        %v627 = vlog2.pop %v611
        %v628 = vmul.f32 %v627, 0.6931472
        %v629 = vlog2.pop %v612
        %v630 = vmul.f32 %v629, 0.6931472
        %v631 = vlog2.pop %v613
        %v632 = vmul.f32 %v631, 0.6931472
        %v633 = vlog2.pop %v614
        %v634 = vmul.f32 %v633, 0.6931472
        %v635 = vlog2.pop %v615
        %v636 = vmul.f32 %v635, 0.6931472
        %v637 = vlog2.pop %v616
        %v638 = vmul.f32 %v637, 0.6931472
        %v639 = vlog2.pop %v617
        %v640 = vmul.f32 %v639, 0.6931472
        %v641 = vlog2.pop %v618
        %v642 = vmul.f32 %v641, 0.6931472
        %v643 = vlog2.pop %v619
        %v644 = vmul.f32 %v643, 0.6931472
        %v645 = vlog2.pop %v620
        %v646 = vmul.f32 %v645, 0.6931472
        %v647 = vlog2.pop %v621
        %v648 = vmul.f32 %v647, 0.6931472
        %v649 = vlog2.pop %v622
        %v650 = vmul.f32 %v649, 0.6931472
        %v651 = vlog2.pop %v623
        %v652 = vmul.f32 %v651, 0.6931472
        %v653 = vlog2.pop %v624
        %v654 = vmul.f32 %v653, 0.6931472
        %v655 = vlog2.pop %v625
        %v656 = vmul.f32 %v655, 0.6931472
        %v657 = vlog2.pop %v626
        %v658 = vmul.f32 %v657, 0.6931472
        %v659 = vld [vmem:[#allocation2] sm:$0xff]
        %v660 = vadd.f32 %v628, %v630
        %v661 = vadd.f32 %v660, %v632
        %v662 = vadd.f32 %v661, %v634
        %v663 = vadd.f32 %v662, %v636
        %v664 = vadd.f32 %v663, %v638
        %v665 = vadd.f32 %v664, %v640
        %v666 = vadd.f32 %v665, %v642
        %v667 = vadd.f32 %v666, %v644
        %v668 = vadd.f32 %v667, %v646
        %v669 = vadd.f32 %v668, %v648
        %v670 = vadd.f32 %v669, %v650
        %v671 = vadd.f32 %v670, %v652
        %v672 = vadd.f32 %v671, %v654
        %v673 = vadd.f32 %v672, %v656
        %v674 = vadd.f32 %v673, %v658
        %v675 = vadd.f32 %v659, %v674
        %676 = vst [vmem:[#allocation2] sm:$0xff] %v675
        %p677 = scmp.eq.s32.totalorder %s27, 7
        // Predicated region
        $region57: #{tpu_custom_call.1} parent=35 // pred_check
          %p678 = pneg %p677
        $region58: #{tpu_custom_call.1} parent=35 // pred_check_branch
          %680 = sbr.rel (%p678) target = $region60
        $region59: #{tpu_custom_call.1} parent=35 // pred_region
          %v681 = vld [vmem:[#allocation2] sm:$0xff]
          %682 = vadd.xlane.f32.xlu0 %v681
          %v683 = vpop.xlane.xlu0 %682
          %v684 = vrot.slane %v683, 4
          %v685 = vadd.f32 %v683, %v684
          %v686 = vrot.slane %v685, 2
          %v687 = vadd.f32 %v685, %v686
          %v688 = vrot.slane %v687, 1
          %v689 = vadd.f32 %v687, %v688
          %s690 = vtos %v689
          %s691 = scalar_lea.smem [#allocation12], 0
          %692 = sst [smem:[%s691]] %s690
        $region60: #{tpu_custom_call.1} parent=35 // pred_fallthru
          _
        // Predicated region
        $region61: #{tpu_custom_call.1} parent=35 // pred_check
          %p693 = pneg %p145
        $region62: #{tpu_custom_call.1} parent=35 // pred_check_branch
          %695 = sbr.rel (%p693) target = $region64
        $region63: #{tpu_custom_call.1} parent=35 // pred_region
          %s697 = ssub.s32 16, 16
          %698 = vsyncadd [#allocation6], %s697
          %s699 = smul.addr %s26, 16
          %s700 = scalar_lea.hbm %s4, %s699
          %703 = dma.smem_to_hbm [#allocation12], 16, %s700, [#allocation6]
        $region64: #{tpu_custom_call.1} parent=35 // pred_fallthru
          _
        // Predicated region
        $region65: #{tpu_custom_call.1} parent=35 // pred_check
          %p704 = pneg %p145
        $region66: #{tpu_custom_call.1} parent=35 // pred_check_branch
          %706 = sbr.rel (%p704) target = $region68
        $region67: #{tpu_custom_call.1} parent=35 // pred_region
          %707 = dma.done [#allocation6], 16
        $region68: #{tpu_custom_call.1} parent=35 // pred_fallthru
          _
        %708 = sfence
      $region36: #{tpu_custom_call.1} parent=5 // pred_fallthru
        _
      %p709 = scmp.le.s32.totalorder 2, %s17
      // Predicated region
      $region69: #{tpu_custom_call.1} parent=5 // pred_check
        %p710 = pneg %p709
      $region70: #{tpu_custom_call.1} parent=5 // pred_check_branch
        %712 = sbr.rel (%p710) target = $region72
      $region71: #{tpu_custom_call.1} parent=5 // pred_region
        %s713 = ssub.s32 %s17, 2
      $region72: #{tpu_custom_call.1} parent=5 // pred_fallthru
        _
    $region6: #{tpu_custom_call.1} parent=1 // loop_footer
      %s21 = sadd.s32 1, %s17
    $region7: #{tpu_custom_call.1} parent=1 // loop_footer_branch
      %16 = sbr.rel target = $region3
    $region8: #{tpu_custom_call.1} parent=1 // loop_exit
      _
    %714 = vsyncpa [#allocation4], 1
    %s715 = scalar_lea.sflag [#allocation4], 1
    %716 = vsyncpa %s715, 1
    %717 = vsyncpa [#allocation5], 1
    %s718 = scalar_lea.sflag [#allocation5], 1
    %719 = vsyncpa %s718, 1
    %720 = vsyncpa [#allocation6], 1
    %s721 = scalar_lea.sflag [#allocation6], 1
    %722 = vsyncpa %s721, 1
    %723 = vsyncpa [#allocation7], 1
    %s724 = scalar_lea.sflag [#allocation7], 1
    %725 = vsyncpa %s724, 1
    %726 = vsyncpa [#allocation10], 1

</llo_original>
